<compile_context>
chip_gen: v6e
topology: v6e:2x2x1
jax: 0.10.0
libtpu: 0.0.40
codegen_flags: <defaults>
</compile_context>

<pallas_src>
import numpy as np
import jax
import jax.numpy as jnp
from jax.experimental import pallas as pl
from jax.experimental.pallas import tpu as pltpu


def _round_up(x, m):
    return (x + m - 1) // m * m


def _linear_kernel(x_ref, w_ref, b_ref, o_ref):
    # x_ref: (TM, K') row tile; w_ref: (K', N') resident weight;
    # b_ref: (1, N') resident bias.  MXU matmul, f32 accumulation,
    # HIGHEST precision for f32 parity; bias add on the VPU.
    acc = jnp.dot(
        x_ref[...],
        w_ref[...],
        preferred_element_type=jnp.float32,
        precision=jax.lax.Precision.HIGHEST,
    )
    o_ref[...] = (acc + b_ref[...]).astype(o_ref.dtype)


def _choose_tile(m_rows, tile_m):
    """Pick a row-tile size: big, multiple of 8, >=2 grid steps when possible."""
    if m_rows <= 8:
        # Block equal to the (tiny) full array is always a legal tile shape.
        return m_rows
    tm = min(_round_up(tile_m, 8), _round_up(m_rows, 8))
    # Prefer >=2 grid steps so v7x's two TensorCores both get work; the extra
    # grid step is noise (~0.35 us) on single-TC v5e/v6e.
    if pl.cdiv(m_rows, tm) == 1 and m_rows >= 16:
        tm = _round_up(pl.cdiv(m_rows, 2), 8)
    return tm


def pallas_linear(x, weight, bias, *, tile_m=4096):
    """y = x @ weight.T + bias   (torch.nn.Linear semantics).

    x:      (..., K)
    weight: (N, K)   -- PyTorch layout
    bias:   (N,)
    """
    orig_shape = x.shape
    K = orig_shape[-1]
    N, K2 = weight.shape
    assert K == K2, "feature dim mismatch"

    # nn.Linear acts on the last dim only; flatten the rest (free reshape).
    x2 = x.reshape(-1, K)
    M = x2.shape[0]

    wt = weight.T.astype(x.dtype)  # (K, N)

    # Lane-dense output packing: fold pairs of rows so the output minor dim is
    # 2*N = 128 (unmasked vst) instead of 64 (masked vst.msk).  Implemented as
    # a block-diagonal weight so the kernel stays a plain matmul and no
    # in-kernel relayout is needed.  Fall back to the plain layout for odd M.
    pack = (M % 2 == 0) and (2 * N == 128)
    if pack:
        x_in = x2.reshape(M // 2, 2 * K)                      # free reshape
        zeros = jnp.zeros_like(wt)
        w_in = jnp.concatenate(
            [jnp.concatenate([wt, zeros], axis=1),
             jnp.concatenate([zeros, wt], axis=1)], axis=0)   # (2K, 2N)
        b_in = jnp.concatenate([bias, bias]).reshape(1, 2 * N)
        m_rows, k_in, n_out = M // 2, 2 * K, 2 * N
    else:
        x_in = x2
        w_in = wt
        b_in = bias.reshape(1, N)
        m_rows, k_in, n_out = M, K, N

    tm = _choose_tile(m_rows, tile_m)
    grid = (pl.cdiv(m_rows, tm),)   # partial boundary block handled by Pallas

    out = pl.pallas_call(
        _linear_kernel,
        out_shape=jax.ShapeDtypeStruct((m_rows, n_out), x.dtype),
        grid_spec=pltpu.PrefetchScalarGridSpec(
            num_scalar_prefetch=0,
            grid=grid,
            in_specs=[
                pl.BlockSpec((tm, k_in), lambda i: (i, 0)),     # streaming x tiles
                pl.BlockSpec((k_in, n_out), lambda i: (0, 0)),  # resident weight
                pl.BlockSpec((1, n_out), lambda i: (0, 0)),     # resident bias
            ],
            out_specs=pl.BlockSpec((tm, n_out), lambda i: (i, 0)),
        ),
        compiler_params=pltpu.CompilerParams(
            # Row tiles are independent -> shard across v7x's 2 TensorCores.
            dimension_semantics=("parallel",),
        ),
    )(x_in, w_in, b_in)

    if pack:
        out = out.reshape(M, N)   # free row-major unfold
    return out.reshape(*orig_shape[:-1], N)


if __name__ == "__main__":
    key = jax.random.PRNGKey(0)
    kw, kb, kx = jax.random.split(key, 3)

    in_features, out_features = 128, 64
    w = jax.random.normal(kw, (out_features, in_features), dtype=jnp.float32) * 0.05
    b = jax.random.normal(kb, (out_features,), dtype=jnp.float32)

    test_shapes = [
        (8, in_features),      # packed (lane-dense) path, single block
        (2, 3, in_features),   # leading dims flattened, packed path
        (7, in_features),      # odd row count -> plain fallback path
        (40, in_features),     # multi-step grid with partial boundary block
    ]
    for shp in test_shapes:
        kx, sub = jax.random.split(kx)
        x = jax.random.normal(sub, shp, dtype=jnp.float32)
        y = jax.block_until_ready(pallas_linear(x, w, b))

        ref = np.asarray(x).reshape(-1, in_features) @ np.asarray(w).T + np.asarray(b)
        ref = ref.reshape(*shp[:-1], out_features)
        assert y.shape == ref.shape
        np.testing.assert_allclose(np.asarray(y), ref, rtol=1e-3, atol=1e-3)

    print("KERNEL_OK")
</pallas_src>

<mosaic_0001>
module attributes {stable_mosaic.version = 11 : i64} {
  func.func @_linear_kernel(%arg0: i32, %arg1: memref<4x256xf32, #tpu.memory_space<vmem>>, %arg2: memref<256x128xf32, #tpu.memory_space<vmem>>, %arg3: memref<1x128xf32, #tpu.memory_space<vmem>>, %arg4: memref<4x128xf32, #tpu.memory_space<vmem>>) attributes {dimension_semantics = [#tpu.dimension_semantics<parallel>], iteration_bounds = array<i64: 1>, scalar_prefetch = 0 : i64, scratch_operands = 0 : i64, tpu.core_type = #tpu.core_type<tc>, window_params = [{transform_indices = @transform_0, window_bounds = array<i64: 4, 256>}, {pipeline_mode = #tpu.pipeline_mode<synchronous>, transform_indices = @transform_1, window_bounds = array<i64: 256, 128>}, {pipeline_mode = #tpu.pipeline_mode<synchronous>, transform_indices = @transform_2, window_bounds = array<i64: 1, 128>}, {transform_indices = @transform_3, window_bounds = array<i64: 4, 128>}]} {
    %c0 = arith.constant 0 : index
    %c0_0 = arith.constant 0 : index
    %0 = vector.load %arg1[%c0, %c0_0] : memref<4x256xf32, #tpu.memory_space<vmem>>, vector<4x256xf32>
    %c0_1 = arith.constant 0 : index
    %c0_2 = arith.constant 0 : index
    %1 = vector.load %arg2[%c0_1, %c0_2] : memref<256x128xf32, #tpu.memory_space<vmem>>, vector<256x128xf32>
    %cst = arith.constant dense<0.000000e+00> : vector<4x128xf32>
    %2 = tpu.matmul %0, %1, %cst {dimension_numbers = #tpu.dot_dimension_numbers<[1], [0], [0], [1], [0, 0, 1, 1], [], []>, precision = #tpu.contract_precision<fp32>} : vector<4x256xf32>, vector<256x128xf32>, vector<4x128xf32> -> vector<4x128xf32>
    %c0_3 = arith.constant 0 : index
    %c0_4 = arith.constant 0 : index
    %3 = vector.load %arg3[%c0_3, %c0_4] : memref<1x128xf32, #tpu.memory_space<vmem>>, vector<1x128xf32>
    %4 = vector.broadcast %3 : vector<1x128xf32> to vector<4x128xf32>
    %5 = arith.addf %2, %4 : vector<4x128xf32>
    %c0_5 = arith.constant 0 : index
    %c0_6 = arith.constant 0 : index
    %6 = vector.load %arg4[%c0_5, %c0_6] : memref<4x128xf32, #tpu.memory_space<vmem>>, vector<4x128xf32>
    tpu.vector_store %arg4[%c0_5, %c0_6], %5 {strides = array<i32>} : memref<4x128xf32, #tpu.memory_space<vmem>>, vector<4x128xf32>,
    return
  }
  func.func @transform_0(%arg0: i32) -> (i32, i32) {
    %c0_i32 = arith.constant 0 : i32
    %c0_i32_0 = arith.constant 0 : i32
    return %arg0, %c0_i32 : i32, i32
  }
  func.func @transform_1(%arg0: i32) -> (i32, i32) {
    %c0_i32 = arith.constant 0 : i32
    %c0_i32_0 = arith.constant 0 : i32
    %c0_i32_1 = arith.constant 0 : i32
    return %c0_i32, %c0_i32_0 : i32, i32
  }
  func.func @transform_2(%arg0: i32) -> (i32, i32) {
    %c0_i32 = arith.constant 0 : i32
    %c0_i32_0 = arith.constant 0 : i32
    %c0_i32_1 = arith.constant 0 : i32
    return %c0_i32, %c0_i32_0 : i32, i32
  }
  func.func @transform_3(%arg0: i32) -> (i32, i32) {
    %c0_i32 = arith.constant 0 : i32
    %c0_i32_0 = arith.constant 0 : i32
    return %arg0, %c0_i32 : i32, i32
  }
}

</mosaic_0001>

<llo_original>
// kernel: tpu_custom_call.1
$region0: #{tpu_custom_call.1}
  #allocation0 [shape = 'u32[]', space=smem, size = 0x4, offset = 0x4, fixed_abs, tag = 'smem constant byte address 0x4 - core index']
  #allocation1 [shape = 'u32[144,128]{1,0:T(1,128)}', space=vmem, size = 0x12000, scoped, tag = 'internal scratch']
  %s0 = inlined_call_operand.hbm [shape: f32[4,256], index: 0, kind: input, shape index: {}]
  %s1 = inlined_call_operand.hbm [shape: f32[256,128], index: 1, kind: input, shape index: {}]
  %s2 = inlined_call_operand.vmem [shape: f32[1,128], index: 2, kind: input, shape index: {}]
  %s3 = inlined_call_operand.hbm [shape: f32[4,128], index: 3, kind: output, shape index: {}]
  %s4 = sld [smem:[#allocation0]]
  $region30: #{tpu_custom_call.1} parent=0
    _
  %s6 = ssub.s32 1, %s4
  %s7 = scalar_select 0, %s6, %s4
  $region1: #{tpu_custom_call.1} parent=0
    #allocation2 [shape = 'u8[4096]{0}', space=vmem, size = 0x1000, scoped, tag = 'input window, operand 0, single buffered']
    #allocation3 [shape = 's32[1]{0}', space=sflag, size = 0x4, scoped, tag = 'scoped memory for tpu_custom_call.1']
    #allocation4 [shape = 's32[1]{0}', space=sflag, size = 0x4, scoped, tag = 'scoped memory for tpu_custom_call.1']
    #allocation5 [shape = 'u8[131072]{0}', space=vmem, size = 0x20000, scoped, tag = 'input window, operand 1, single buffered']
    #allocation6 [shape = 's32[1]{0}', space=sflag, size = 0x4, scoped, tag = 'scoped memory for tpu_custom_call.1']
    #allocation7 [shape = 'u8[2048]{0}', space=vmem, size = 0x800, scoped, tag = 'output window, operand 0, single buffered']
    %8 = vsyncpa [#allocation3], 0
    %9 = vsyncpa [#allocation6], 0
    %10 = vsyncpa [#allocation4], 0
    // Predicated region
    $region2: #{tpu_custom_call.1} parent=1 // pred_check
      _
    $region3: #{tpu_custom_call.1} parent=1 // pred_check_branch
      %12 = sbr.rel (0) target = $region5
    $region4: #{tpu_custom_call.1} parent=1 // pred_region
      %s14 = ssub.s32 128, 128
      %15 = vsyncadd [#allocation3], %s14
      %s17 = sshll.u32 [#allocation2], 4
      %s18 = int_to_ptr.vmem [resolvable:$true] %s17
      %20 = dma.hbm_to_vmem [thread:$0]  %s0, 128, %s18, [#allocation3]
    $region5: #{tpu_custom_call.1} parent=1 // pred_fallthru
      _
    // Predicated region
    $region6: #{tpu_custom_call.1} parent=1 // pred_check
      _
    $region7: #{tpu_custom_call.1} parent=1 // pred_check_branch
      %22 = sbr.rel (0) target = $region9
    $region8: #{tpu_custom_call.1} parent=1 // pred_region
      %s24 = ssub.s32 4096, 4096
      %25 = vsyncadd [#allocation6], %s24
      %s26 = sshll.u32 [#allocation5], 4
      %s27 = int_to_ptr.vmem [resolvable:$true] %s26
      %32 = dma.hbm_to_vmem [thread:$0]  %s1, 4096, %s27, [#allocation6], 128, 128, 8
    $region9: #{tpu_custom_call.1} parent=1 // pred_fallthru
      _
    // Predicated region
    $region10: #{tpu_custom_call.1} parent=1 // pred_check
      _
    $region11: #{tpu_custom_call.1} parent=1 // pred_check_branch
      %34 = sbr.rel (0) target = $region13
    $region12: #{tpu_custom_call.1} parent=1 // pred_region
      _
    $region13: #{tpu_custom_call.1} parent=1 // pred_fallthru
      _
    // Predicated region
    $region14: #{tpu_custom_call.1} parent=1 // pred_check
      _
    $region15: #{tpu_custom_call.1} parent=1 // pred_check_branch
      %36 = sbr.rel (0) target = $region17
    $region16: #{tpu_custom_call.1} parent=1 // pred_region
      %37 = dma.done [#allocation3], 128
    $region17: #{tpu_custom_call.1} parent=1 // pred_fallthru
      _
    // Predicated region
    $region18: #{tpu_custom_call.1} parent=1 // pred_check
      _
    $region19: #{tpu_custom_call.1} parent=1 // pred_check_branch
      %39 = sbr.rel (0) target = $region21
    $region20: #{tpu_custom_call.1} parent=1 // pred_region
      %40 = dma.done [#allocation6], 4096
    $region21: #{tpu_custom_call.1} parent=1 // pred_fallthru
      _
    %v41 = vld [vmem:[#allocation2] sm:$0xff]
    %v42 = vld [vmem:[#allocation5] sm:$0xff]
    %v43 = vld [vmem:[#allocation5 + $0x8] sm:$0xff]
    %v44 = vld [vmem:[#allocation5 + $0x10] sm:$0xff]
    %v45 = vld [vmem:[#allocation5 + $0x18] sm:$0xff]
    %v46 = vld [vmem:[#allocation5 + $0x20] sm:$0xff]
    %v47 = vld [vmem:[#allocation5 + $0x28] sm:$0xff]
    %v48 = vld [vmem:[#allocation5 + $0x30] sm:$0xff]
    %v49 = vld [vmem:[#allocation5 + $0x38] sm:$0xff]
    %v50 = vld [vmem:[#allocation5 + $0x40] sm:$0xff]
    %v51 = vld [vmem:[#allocation5 + $0x48] sm:$0xff]
    %v52 = vld [vmem:[#allocation5 + $0x50] sm:$0xff]
    %v53 = vld [vmem:[#allocation5 + $0x58] sm:$0xff]
    %v54 = vld [vmem:[#allocation5 + $0x60] sm:$0xff]
    %v55 = vld [vmem:[#allocation5 + $0x68] sm:$0xff]
    %v56 = vld [vmem:[#allocation5 + $0x70] sm:$0xff]
    %v57 = vld [vmem:[#allocation5 + $0x78] sm:$0xff]
    %v58 = vld [vmem:[#allocation5 + $0x80] sm:$0xff]
    %v59 = vld [vmem:[#allocation5 + $0x88] sm:$0xff]
    %v60 = vld [vmem:[#allocation5 + $0x90] sm:$0xff]
    %v61 = vld [vmem:[#allocation5 + $0x98] sm:$0xff]
    %v62 = vld [vmem:[#allocation5 + $0xa0] sm:$0xff]
    %v63 = vld [vmem:[#allocation5 + $0xa8] sm:$0xff]
    %v64 = vld [vmem:[#allocation5 + $0xb0] sm:$0xff]
    %v65 = vld [vmem:[#allocation5 + $0xb8] sm:$0xff]
    %v66 = vld [vmem:[#allocation5 + $0xc0] sm:$0xff]
    %v67 = vld [vmem:[#allocation5 + $0xc8] sm:$0xff]
    %v68 = vld [vmem:[#allocation5 + $0xd0] sm:$0xff]
    %v69 = vld [vmem:[#allocation5 + $0xd8] sm:$0xff]
    %v70 = vld [vmem:[#allocation5 + $0xe0] sm:$0xff]
    %v71 = vld [vmem:[#allocation5 + $0xe8] sm:$0xff]
    %v72 = vld [vmem:[#allocation5 + $0xf0] sm:$0xff]
    %v73 = vld [vmem:[#allocation5 + $0xf8] sm:$0xff]
    %v74 = vld [vmem:[%s2] sm:$0x1]
    %v76 = vlaneseq
    %v77 = vshrl.u32 %v76, 7
    %v78 = vsub.s32 0, %v77
    %v79 = vrot.slane %v74, %v78
    %v82 = vcombine.high %v41, %v41
    %84 = vmatprep.subr.mxu0 0.0
    %v85 = vand.u32 %v57, 4294901760
    %86 = vmatpush1.msra.mxu0 %v85
    %87 = vmatprep.subr.mxu0 0.0
    %v88 = vand.u32 %v56, 4294901760
    %89 = vmatpush1.msra.mxu0 %v88
    %90 = vmatprep.subr.mxu0 0.0
    %v91 = vand.u32 %v55, 4294901760
    %92 = vmatpush1.msra.mxu0 %v91
    %93 = vmatprep.subr.mxu0 0.0
    %v94 = vand.u32 %v54, 4294901760
    %95 = vmatpush1.msra.mxu0 %v94
    %96 = vmatprep.subr.mxu0 0.0
    %v97 = vand.u32 %v53, 4294901760
    %98 = vmatpush1.msra.mxu0 %v97
    %99 = vmatprep.subr.mxu0 0.0
    %v100 = vand.u32 %v52, 4294901760
    %101 = vmatpush1.msra.mxu0 %v100
    %102 = vmatprep.subr.mxu0 0.0
    %v103 = vand.u32 %v51, 4294901760
    %104 = vmatpush1.msra.mxu0 %v103
    %105 = vmatprep.subr.mxu0 0.0
    %v106 = vand.u32 %v50, 4294901760
    %107 = vmatpush1.msra.mxu0 %v106
    %108 = vmatprep.subr.mxu0 0.0
    %v109 = vand.u32 %v49, 4294901760
    %110 = vmatpush1.msra.mxu0 %v109
    %111 = vmatprep.subr.mxu0 0.0
    %v112 = vand.u32 %v48, 4294901760
    %113 = vmatpush1.msra.mxu0 %v112
    %114 = vmatprep.subr.mxu0 0.0
    %v115 = vand.u32 %v47, 4294901760
    %116 = vmatpush1.msra.mxu0 %v115
    %117 = vmatprep.subr.mxu0 0.0
    %v118 = vand.u32 %v46, 4294901760
    %119 = vmatpush1.msra.mxu0 %v118
    %120 = vmatprep.subr.mxu0 0.0
    %v121 = vand.u32 %v45, 4294901760
    %122 = vmatpush1.msra.mxu0 %v121
    %123 = vmatprep.subr.mxu0 0.0
    %v124 = vand.u32 %v44, 4294901760
    %125 = vmatpush1.msra.mxu0 %v124
    %126 = vmatprep.subr.mxu0 0.0
    %v127 = vand.u32 %v43, 4294901760
    %128 = vmatpush1.msra.mxu0 %v127
    %129 = vmatprep.subr.mxu0 0.0
    %v130 = vand.u32 %v42, 4294901760
    %131 = vmatpush1.msra.mxu0 %v130
    %132 = vmatprep.subr.mxu0 0.0
    %v133 = vand.u32 %v73, 4294901760
    %134 = vmatpush2.msra.mxu0 %v133
    %135 = vmatprep.subr.mxu0 0.0
    %v136 = vand.u32 %v72, 4294901760
    %137 = vmatpush2.msra.mxu0 %v136
    %138 = vmatprep.subr.mxu0 0.0
    %v139 = vand.u32 %v71, 4294901760
    %140 = vmatpush2.msra.mxu0 %v139
    %141 = vmatprep.subr.mxu0 0.0
    %v142 = vand.u32 %v70, 4294901760
    %143 = vmatpush2.msra.mxu0 %v142
    %144 = vmatprep.subr.mxu0 0.0
    %v145 = vand.u32 %v69, 4294901760
    %146 = vmatpush2.msra.mxu0 %v145
    %147 = vmatprep.subr.mxu0 0.0
    %v148 = vand.u32 %v68, 4294901760
    %149 = vmatpush2.msra.mxu0 %v148
    %150 = vmatprep.subr.mxu0 0.0
    %v151 = vand.u32 %v67, 4294901760
    %152 = vmatpush2.msra.mxu0 %v151
    %153 = vmatprep.subr.mxu0 0.0
    %v154 = vand.u32 %v66, 4294901760
    %155 = vmatpush2.msra.mxu0 %v154
    %156 = vmatprep.subr.mxu0 0.0
    %v157 = vand.u32 %v65, 4294901760
    %158 = vmatpush2.msra.mxu0 %v157
    %159 = vmatprep.subr.mxu0 0.0
    %v160 = vand.u32 %v64, 4294901760
    %161 = vmatpush2.msra.mxu0 %v160
    %162 = vmatprep.subr.mxu0 0.0
    %v163 = vand.u32 %v63, 4294901760
    %164 = vmatpush2.msra.mxu0 %v163
    %165 = vmatprep.subr.mxu0 0.0
    %v166 = vand.u32 %v62, 4294901760
    %167 = vmatpush2.msra.mxu0 %v166
    %168 = vmatprep.subr.mxu0 0.0
    %v169 = vand.u32 %v61, 4294901760
    %170 = vmatpush2.msra.mxu0 %v169
    %171 = vmatprep.subr.mxu0 0.0
    %v172 = vand.u32 %v60, 4294901760
    %173 = vmatpush2.msra.mxu0 %v172
    %174 = vmatprep.subr.mxu0 0.0
    %v175 = vand.u32 %v59, 4294901760
    %176 = vmatpush2.msra.mxu0 %v175
    %177 = vmatprep.subr.mxu0 0.0
    %v178 = vand.u32 %v58, 4294901760
    %179 = vmatpush2.msra.mxu0 %v178
    %v180 = vand.u32 %v82, 4294901760
    %v181 = vsub.f32 %v82, %v180
    %v182 = vand.u32 %v181, 4294901760
    %v183 = vsub.f32 %v181, %v182
    %v184 = vand.u32 %v183, 4294901760
    %185 = vmatprep.mubr.f32.mxu0 %v184
    %v186 = vand.u32 %v41, 4294901760
    %v187 = vsub.f32 %v41, %v186
    %v188 = vand.u32 %v187, 4294901760
    %v189 = vsub.f32 %v187, %v188
    %v190 = vand.u32 %v189, 4294901760
    %191 = vmatmul.mubr.f32.gmra.mxu0 %v190
    %v192 = vpop.f32.mrf.mxu0
    %v193 = vadd.f32 %v79, %v192
    %v194 = vpop.f32.mrf.mxu0
    %195 = vdwg.mxu0
    %196 = vmatprep.subr.mxu0 0.0
    %v197 = vand.u32 %v57, 4294901760
    %v198 = vsub.f32 %v57, %v197
    %v199 = vand.u32 %v198, 4294901760
    %v200 = vsub.f32 %v198, %v199
    %v201 = vand.u32 %v200, 4294901760
    %202 = vmatpush1.msra.mxu0 %v201
    %203 = vmatprep.subr.mxu0 0.0
    %v204 = vand.u32 %v56, 4294901760
    %v205 = vsub.f32 %v56, %v204
    %v206 = vand.u32 %v205, 4294901760
    %v207 = vsub.f32 %v205, %v206
    %v208 = vand.u32 %v207, 4294901760
    %209 = vmatpush1.msra.mxu0 %v208
    %210 = vmatprep.subr.mxu0 0.0
    %v211 = vand.u32 %v55, 4294901760
    %v212 = vsub.f32 %v55, %v211
    %v213 = vand.u32 %v212, 4294901760
    %v214 = vsub.f32 %v212, %v213
    %v215 = vand.u32 %v214, 4294901760
    %216 = vmatpush1.msra.mxu0 %v215
    %217 = vmatprep.subr.mxu0 0.0
    %v218 = vand.u32 %v54, 4294901760
    %v219 = vsub.f32 %v54, %v218
    %v220 = vand.u32 %v219, 4294901760
    %v221 = vsub.f32 %v219, %v220
    %v222 = vand.u32 %v221, 4294901760
    %223 = vmatpush1.msra.mxu0 %v222
    %224 = vmatprep.subr.mxu0 0.0
    %v225 = vand.u32 %v53, 4294901760
    %v226 = vsub.f32 %v53, %v225
    %v227 = vand.u32 %v226, 4294901760
    %v228 = vsub.f32 %v226, %v227
    %v229 = vand.u32 %v228, 4294901760
    %230 = vmatpush1.msra.mxu0 %v229
    %231 = vmatprep.subr.mxu0 0.0
    %v232 = vand.u32 %v52, 4294901760
    %v233 = vsub.f32 %v52, %v232
    %v234 = vand.u32 %v233, 4294901760
    %v235 = vsub.f32 %v233, %v234
    %v236 = vand.u32 %v235, 4294901760
    %237 = vmatpush1.msra.mxu0 %v236
    %238 = vmatprep.subr.mxu0 0.0
    %v239 = vand.u32 %v51, 4294901760
    %v240 = vsub.f32 %v51, %v239
    %v241 = vand.u32 %v240, 4294901760
    %v242 = vsub.f32 %v240, %v241
    %v243 = vand.u32 %v242, 4294901760
    %244 = vmatpush1.msra.mxu0 %v243
    %245 = vmatprep.subr.mxu0 0.0
    %v246 = vand.u32 %v50, 4294901760
    %v247 = vsub.f32 %v50, %v246
    %v248 = vand.u32 %v247, 4294901760
    %v249 = vsub.f32 %v247, %v248
    %v250 = vand.u32 %v249, 4294901760
    %251 = vmatpush1.msra.mxu0 %v250
    %252 = vmatprep.subr.mxu0 0.0
    %v253 = vand.u32 %v49, 4294901760
    %v254 = vsub.f32 %v49, %v253
    %v255 = vand.u32 %v254, 4294901760
    %v256 = vsub.f32 %v254, %v255
    %v257 = vand.u32 %v256, 4294901760
    %258 = vmatpush1.msra.mxu0 %v257
    %259 = vmatprep.subr.mxu0 0.0
    %v260 = vand.u32 %v48, 4294901760
    %v261 = vsub.f32 %v48, %v260
    %v262 = vand.u32 %v261, 4294901760
    %v263 = vsub.f32 %v261, %v262
    %v264 = vand.u32 %v263, 4294901760
    %265 = vmatpush1.msra.mxu0 %v264
    %266 = vmatprep.subr.mxu0 0.0
    %v267 = vand.u32 %v47, 4294901760
    %v268 = vsub.f32 %v47, %v267
    %v269 = vand.u32 %v268, 4294901760
    %v270 = vsub.f32 %v268, %v269
    %v271 = vand.u32 %v270, 4294901760
    %272 = vmatpush1.msra.mxu0 %v271
    %273 = vmatprep.subr.mxu0 0.0
    %v274 = vand.u32 %v46, 4294901760
    %v275 = vsub.f32 %v46, %v274
    %v276 = vand.u32 %v275, 4294901760
    %v277 = vsub.f32 %v275, %v276
    %v278 = vand.u32 %v277, 4294901760
    %279 = vmatpush1.msra.mxu0 %v278
    %280 = vmatprep.subr.mxu0 0.0
    %v281 = vand.u32 %v45, 4294901760
    %v282 = vsub.f32 %v45, %v281
    %v283 = vand.u32 %v282, 4294901760
    %v284 = vsub.f32 %v282, %v283
    %v285 = vand.u32 %v284, 4294901760
    %286 = vmatpush1.msra.mxu0 %v285
    %287 = vmatprep.subr.mxu0 0.0
    %v288 = vand.u32 %v44, 4294901760
    %v289 = vsub.f32 %v44, %v288
    %v290 = vand.u32 %v289, 4294901760
    %v291 = vsub.f32 %v289, %v290
    %v292 = vand.u32 %v291, 4294901760
    %293 = vmatpush1.msra.mxu0 %v292
    %294 = vmatprep.subr.mxu0 0.0
    %v295 = vand.u32 %v43, 4294901760
    %v296 = vsub.f32 %v43, %v295
    %v297 = vand.u32 %v296, 4294901760
    %v298 = vsub.f32 %v296, %v297
    %v299 = vand.u32 %v298, 4294901760
    %300 = vmatpush1.msra.mxu0 %v299
    %301 = vmatprep.subr.mxu0 0.0
    %v302 = vand.u32 %v42, 4294901760
    %v303 = vsub.f32 %v42, %v302
    %v304 = vand.u32 %v303, 4294901760
    %v305 = vsub.f32 %v303, %v304
    %v306 = vand.u32 %v305, 4294901760
    %307 = vmatpush1.msra.mxu0 %v306
    %308 = vmatprep.subr.mxu0 0.0
    %v309 = vand.u32 %v73, 4294901760
    %v310 = vsub.f32 %v73, %v309
    %v311 = vand.u32 %v310, 4294901760
    %v312 = vsub.f32 %v310, %v311
    %v313 = vand.u32 %v312, 4294901760
    %314 = vmatpush2.msra.mxu0 %v313
    %315 = vmatprep.subr.mxu0 0.0
    %v316 = vand.u32 %v72, 4294901760
    %v317 = vsub.f32 %v72, %v316
    %v318 = vand.u32 %v317, 4294901760
    %v319 = vsub.f32 %v317, %v318
    %v320 = vand.u32 %v319, 4294901760
    %321 = vmatpush2.msra.mxu0 %v320
    %322 = vmatprep.subr.mxu0 0.0
    %v323 = vand.u32 %v71, 4294901760
    %v324 = vsub.f32 %v71, %v323
    %v325 = vand.u32 %v324, 4294901760
    %v326 = vsub.f32 %v324, %v325
    %v327 = vand.u32 %v326, 4294901760
    %328 = vmatpush2.msra.mxu0 %v327
    %329 = vmatprep.subr.mxu0 0.0
    %v330 = vand.u32 %v70, 4294901760
    %v331 = vsub.f32 %v70, %v330
    %v332 = vand.u32 %v331, 4294901760
    %v333 = vsub.f32 %v331, %v332
    %v334 = vand.u32 %v333, 4294901760
    %335 = vmatpush2.msra.mxu0 %v334
    %336 = vmatprep.subr.mxu0 0.0
    %v337 = vand.u32 %v69, 4294901760
    %v338 = vsub.f32 %v69, %v337
    %v339 = vand.u32 %v338, 4294901760
    %v340 = vsub.f32 %v338, %v339
    %v341 = vand.u32 %v340, 4294901760
    %342 = vmatpush2.msra.mxu0 %v341
    %343 = vmatprep.subr.mxu0 0.0
    %v344 = vand.u32 %v68, 4294901760
    %v345 = vsub.f32 %v68, %v344
    %v346 = vand.u32 %v345, 4294901760
    %v347 = vsub.f32 %v345, %v346
    %v348 = vand.u32 %v347, 4294901760
    %349 = vmatpush2.msra.mxu0 %v348
    %350 = vmatprep.subr.mxu0 0.0
    %v351 = vand.u32 %v67, 4294901760
    %v352 = vsub.f32 %v67, %v351
    %v353 = vand.u32 %v352, 4294901760
    %v354 = vsub.f32 %v352, %v353
    %v355 = vand.u32 %v354, 4294901760
    %356 = vmatpush2.msra.mxu0 %v355
    %357 = vmatprep.subr.mxu0 0.0
    %v358 = vand.u32 %v66, 4294901760
    %v359 = vsub.f32 %v66, %v358
    %v360 = vand.u32 %v359, 4294901760
    %v361 = vsub.f32 %v359, %v360
    %v362 = vand.u32 %v361, 4294901760
    %363 = vmatpush2.msra.mxu0 %v362
    %364 = vmatprep.subr.mxu0 0.0
    %v365 = vand.u32 %v65, 4294901760
    %v366 = vsub.f32 %v65, %v365
    %v367 = vand.u32 %v366, 4294901760
    %v368 = vsub.f32 %v366, %v367
    %v369 = vand.u32 %v368, 4294901760
    %370 = vmatpush2.msra.mxu0 %v369
    %371 = vmatprep.subr.mxu0 0.0
    %v372 = vand.u32 %v64, 4294901760
    %v373 = vsub.f32 %v64, %v372
    %v374 = vand.u32 %v373, 4294901760
    %v375 = vsub.f32 %v373, %v374
    %v376 = vand.u32 %v375, 4294901760
    %377 = vmatpush2.msra.mxu0 %v376
    %378 = vmatprep.subr.mxu0 0.0
    %v379 = vand.u32 %v63, 4294901760
    %v380 = vsub.f32 %v63, %v379
    %v381 = vand.u32 %v380, 4294901760
    %v382 = vsub.f32 %v380, %v381
    %v383 = vand.u32 %v382, 4294901760
    %384 = vmatpush2.msra.mxu0 %v383
    %385 = vmatprep.subr.mxu0 0.0
    %v386 = vand.u32 %v62, 4294901760
    %v387 = vsub.f32 %v62, %v386
    %v388 = vand.u32 %v387, 4294901760
    %v389 = vsub.f32 %v387, %v388
    %v390 = vand.u32 %v389, 4294901760
    %391 = vmatpush2.msra.mxu0 %v390
    %392 = vmatprep.subr.mxu0 0.0
    %v393 = vand.u32 %v61, 4294901760
    %v394 = vsub.f32 %v61, %v393
    %v395 = vand.u32 %v394, 4294901760
    %v396 = vsub.f32 %v394, %v395
    %v397 = vand.u32 %v396, 4294901760
    %398 = vmatpush2.msra.mxu0 %v397
    %399 = vmatprep.subr.mxu0 0.0
    %v400 = vand.u32 %v60, 4294901760
    %v401 = vsub.f32 %v60, %v400
    %v402 = vand.u32 %v401, 4294901760
    %v403 = vsub.f32 %v401, %v402
    %v404 = vand.u32 %v403, 4294901760
    %405 = vmatpush2.msra.mxu0 %v404
    %406 = vmatprep.subr.mxu0 0.0
    %v407 = vand.u32 %v59, 4294901760
    %v408 = vsub.f32 %v59, %v407
    %v409 = vand.u32 %v408, 4294901760
    %v410 = vsub.f32 %v408, %v409
    %v411 = vand.u32 %v410, 4294901760
    %412 = vmatpush2.msra.mxu0 %v411
    %413 = vmatprep.subr.mxu0 0.0
    %v414 = vand.u32 %v58, 4294901760
    %v415 = vsub.f32 %v58, %v414
    %v416 = vand.u32 %v415, 4294901760
    %v417 = vsub.f32 %v415, %v416
    %v418 = vand.u32 %v417, 4294901760
    %419 = vmatpush2.msra.mxu0 %v418
    %v420 = vand.u32 %v82, 4294901760
    %421 = vmatprep.mubr.f32.mxu0 %v420
    %v422 = vand.u32 %v41, 4294901760
    %423 = vmatmul.mubr.f32.gmra.mxu0 %v422
    %v424 = vpop.f32.mrf.mxu0
    %v425 = vadd.f32 %v193, %v424
    %v426 = vpop.f32.mrf.mxu0
    %427 = vdwg.mxu0
    %428 = vmatprep.subr.mxu0 0.0
    %v429 = vand.u32 %v57, 4294901760
    %v430 = vsub.f32 %v57, %v429
    %431 = vmatpush1.msra.mxu0 %v430
    %432 = vmatprep.subr.mxu0 0.0
    %v433 = vand.u32 %v56, 4294901760
    %v434 = vsub.f32 %v56, %v433
    %435 = vmatpush1.msra.mxu0 %v434
    %436 = vmatprep.subr.mxu0 0.0
    %v437 = vand.u32 %v55, 4294901760
    %v438 = vsub.f32 %v55, %v437
    %439 = vmatpush1.msra.mxu0 %v438
    %440 = vmatprep.subr.mxu0 0.0
    %v441 = vand.u32 %v54, 4294901760
    %v442 = vsub.f32 %v54, %v441
    %443 = vmatpush1.msra.mxu0 %v442
    %444 = vmatprep.subr.mxu0 0.0
    %v445 = vand.u32 %v53, 4294901760
    %v446 = vsub.f32 %v53, %v445
    %447 = vmatpush1.msra.mxu0 %v446
    %448 = vmatprep.subr.mxu0 0.0
    %v449 = vand.u32 %v52, 4294901760
    %v450 = vsub.f32 %v52, %v449
    %451 = vmatpush1.msra.mxu0 %v450
    %452 = vmatprep.subr.mxu0 0.0
    %v453 = vand.u32 %v51, 4294901760
    %v454 = vsub.f32 %v51, %v453
    %455 = vmatpush1.msra.mxu0 %v454
    %456 = vmatprep.subr.mxu0 0.0
    %v457 = vand.u32 %v50, 4294901760
    %v458 = vsub.f32 %v50, %v457
    %459 = vmatpush1.msra.mxu0 %v458
    %460 = vmatprep.subr.mxu0 0.0
    %v461 = vand.u32 %v49, 4294901760
    %v462 = vsub.f32 %v49, %v461
    %463 = vmatpush1.msra.mxu0 %v462
    %464 = vmatprep.subr.mxu0 0.0
    %v465 = vand.u32 %v48, 4294901760
    %v466 = vsub.f32 %v48, %v465
    %467 = vmatpush1.msra.mxu0 %v466
    %468 = vmatprep.subr.mxu0 0.0
    %v469 = vand.u32 %v47, 4294901760
    %v470 = vsub.f32 %v47, %v469
    %471 = vmatpush1.msra.mxu0 %v470
    %472 = vmatprep.subr.mxu0 0.0
    %v473 = vand.u32 %v46, 4294901760
    %v474 = vsub.f32 %v46, %v473
    %475 = vmatpush1.msra.mxu0 %v474
    %476 = vmatprep.subr.mxu0 0.0
    %v477 = vand.u32 %v45, 4294901760
    %v478 = vsub.f32 %v45, %v477
    %479 = vmatpush1.msra.mxu0 %v478
    %480 = vmatprep.subr.mxu0 0.0
    %v481 = vand.u32 %v44, 4294901760
    %v482 = vsub.f32 %v44, %v481
    %483 = vmatpush1.msra.mxu0 %v482
    %484 = vmatprep.subr.mxu0 0.0
    %v485 = vand.u32 %v43, 4294901760
    %v486 = vsub.f32 %v43, %v485
    %487 = vmatpush1.msra.mxu0 %v486
    %488 = vmatprep.subr.mxu0 0.0
    %v489 = vand.u32 %v42, 4294901760
    %v490 = vsub.f32 %v42, %v489
    %491 = vmatpush1.msra.mxu0 %v490
    %492 = vmatprep.subr.mxu0 0.0
    %v493 = vand.u32 %v73, 4294901760
    %v494 = vsub.f32 %v73, %v493
    %495 = vmatpush2.msra.mxu0 %v494
    %496 = vmatprep.subr.mxu0 0.0
    %v497 = vand.u32 %v72, 4294901760
    %v498 = vsub.f32 %v72, %v497
    %499 = vmatpush2.msra.mxu0 %v498
    %500 = vmatprep.subr.mxu0 0.0
    %v501 = vand.u32 %v71, 4294901760
    %v502 = vsub.f32 %v71, %v501
    %503 = vmatpush2.msra.mxu0 %v502
    %504 = vmatprep.subr.mxu0 0.0
    %v505 = vand.u32 %v70, 4294901760
    %v506 = vsub.f32 %v70, %v505
    %507 = vmatpush2.msra.mxu0 %v506
    %508 = vmatprep.subr.mxu0 0.0
    %v509 = vand.u32 %v69, 4294901760
    %v510 = vsub.f32 %v69, %v509
    %511 = vmatpush2.msra.mxu0 %v510
    %512 = vmatprep.subr.mxu0 0.0
    %v513 = vand.u32 %v68, 4294901760
    %v514 = vsub.f32 %v68, %v513
    %515 = vmatpush2.msra.mxu0 %v514
    %516 = vmatprep.subr.mxu0 0.0
    %v517 = vand.u32 %v67, 4294901760
    %v518 = vsub.f32 %v67, %v517
    %519 = vmatpush2.msra.mxu0 %v518
    %520 = vmatprep.subr.mxu0 0.0
    %v521 = vand.u32 %v66, 4294901760
    %v522 = vsub.f32 %v66, %v521
    %523 = vmatpush2.msra.mxu0 %v522
    %524 = vmatprep.subr.mxu0 0.0
    %v525 = vand.u32 %v65, 4294901760
    %v526 = vsub.f32 %v65, %v525
    %527 = vmatpush2.msra.mxu0 %v526
    %528 = vmatprep.subr.mxu0 0.0
    %v529 = vand.u32 %v64, 4294901760
    %v530 = vsub.f32 %v64, %v529
    %531 = vmatpush2.msra.mxu0 %v530
    %532 = vmatprep.subr.mxu0 0.0
    %v533 = vand.u32 %v63, 4294901760
    %v534 = vsub.f32 %v63, %v533
    %535 = vmatpush2.msra.mxu0 %v534
    %536 = vmatprep.subr.mxu0 0.0
    %v537 = vand.u32 %v62, 4294901760
    %v538 = vsub.f32 %v62, %v537
    %539 = vmatpush2.msra.mxu0 %v538
    %540 = vmatprep.subr.mxu0 0.0
    %v541 = vand.u32 %v61, 4294901760
    %v542 = vsub.f32 %v61, %v541
    %543 = vmatpush2.msra.mxu0 %v542
    %544 = vmatprep.subr.mxu0 0.0
    %v545 = vand.u32 %v60, 4294901760
    %v546 = vsub.f32 %v60, %v545
    %547 = vmatpush2.msra.mxu0 %v546
    %548 = vmatprep.subr.mxu0 0.0
    %v549 = vand.u32 %v59, 4294901760
    %v550 = vsub.f32 %v59, %v549
    %551 = vmatpush2.msra.mxu0 %v550
    %552 = vmatprep.subr.mxu0 0.0
    %v553 = vand.u32 %v58, 4294901760
    %v554 = vsub.f32 %v58, %v553
    %555 = vmatpush2.msra.mxu0 %v554
    %v556 = vand.u32 %v82, 4294901760
    %v557 = vsub.f32 %v82, %v556
    %558 = vmatprep.mubr.f32.mxu0 %v557
    %v559 = vand.u32 %v41, 4294901760
    %v560 = vsub.f32 %v41, %v559
    %561 = vmatmul.mubr.f32.gmra.mxu0 %v560
    %v562 = vpop.f32.mrf.mxu0
    %v563 = vadd.f32 %v425, %v562
    %v564 = vpop.f32.mrf.mxu0
    %565 = vdwg.mxu0
    %566 = vmatprep.subr.mxu0 0.0
    %v567 = vand.u32 %v57, 4294901760
    %568 = vmatpush1.msra.mxu0 %v567
    %569 = vmatprep.subr.mxu0 0.0
    %v570 = vand.u32 %v56, 4294901760
    %571 = vmatpush1.msra.mxu0 %v570
    %572 = vmatprep.subr.mxu0 0.0
    %v573 = vand.u32 %v55, 4294901760
    %574 = vmatpush1.msra.mxu0 %v573
    %575 = vmatprep.subr.mxu0 0.0
    %v576 = vand.u32 %v54, 4294901760
    %577 = vmatpush1.msra.mxu0 %v576
    %578 = vmatprep.subr.mxu0 0.0
    %v579 = vand.u32 %v53, 4294901760
    %580 = vmatpush1.msra.mxu0 %v579
    %581 = vmatprep.subr.mxu0 0.0
    %v582 = vand.u32 %v52, 4294901760
    %583 = vmatpush1.msra.mxu0 %v582
    %584 = vmatprep.subr.mxu0 0.0
    %v585 = vand.u32 %v51, 4294901760
    %586 = vmatpush1.msra.mxu0 %v585
    %587 = vmatprep.subr.mxu0 0.0
    %v588 = vand.u32 %v50, 4294901760
    %589 = vmatpush1.msra.mxu0 %v588
    %590 = vmatprep.subr.mxu0 0.0
    %v591 = vand.u32 %v49, 4294901760
    %592 = vmatpush1.msra.mxu0 %v591
    %593 = vmatprep.subr.mxu0 0.0
    %v594 = vand.u32 %v48, 4294901760
    %595 = vmatpush1.msra.mxu0 %v594
    %596 = vmatprep.subr.mxu0 0.0
    %v597 = vand.u32 %v47, 4294901760
    %598 = vmatpush1.msra.mxu0 %v597
    %599 = vmatprep.subr.mxu0 0.0
    %v600 = vand.u32 %v46, 4294901760
    %601 = vmatpush1.msra.mxu0 %v600
    %602 = vmatprep.subr.mxu0 0.0
    %v603 = vand.u32 %v45, 4294901760
    %604 = vmatpush1.msra.mxu0 %v603
    %605 = vmatprep.subr.mxu0 0.0
    %v606 = vand.u32 %v44, 4294901760
    %607 = vmatpush1.msra.mxu0 %v606
    %608 = vmatprep.subr.mxu0 0.0
    %v609 = vand.u32 %v43, 4294901760
    %610 = vmatpush1.msra.mxu0 %v609
    %611 = vmatprep.subr.mxu0 0.0
    %v612 = vand.u32 %v42, 4294901760
    %613 = vmatpush1.msra.mxu0 %v612
    %614 = vmatprep.subr.mxu0 0.0
    %v615 = vand.u32 %v73, 4294901760
    %616 = vmatpush2.msra.mxu0 %v615
    %617 = vmatprep.subr.mxu0 0.0
    %v618 = vand.u32 %v72, 4294901760
    %619 = vmatpush2.msra.mxu0 %v618
    %620 = vmatprep.subr.mxu0 0.0
    %v621 = vand.u32 %v71, 4294901760
    %622 = vmatpush2.msra.mxu0 %v621
    %623 = vmatprep.subr.mxu0 0.0
    %v624 = vand.u32 %v70, 4294901760
    %625 = vmatpush2.msra.mxu0 %v624
    %626 = vmatprep.subr.mxu0 0.0
    %v627 = vand.u32 %v69, 4294901760
    %628 = vmatpush2.msra.mxu0 %v627
    %629 = vmatprep.subr.mxu0 0.0
    %v630 = vand.u32 %v68, 4294901760
    %631 = vmatpush2.msra.mxu0 %v630
    %632 = vmatprep.subr.mxu0 0.0
    %v633 = vand.u32 %v67, 4294901760
    %634 = vmatpush2.msra.mxu0 %v633
    %635 = vmatprep.subr.mxu0 0.0
    %v636 = vand.u32 %v66, 4294901760
    %637 = vmatpush2.msra.mxu0 %v636
    %638 = vmatprep.subr.mxu0 0.0
    %v639 = vand.u32 %v65, 4294901760
    %640 = vmatpush2.msra.mxu0 %v639
    %641 = vmatprep.subr.mxu0 0.0
    %v642 = vand.u32 %v64, 4294901760
    %643 = vmatpush2.msra.mxu0 %v642
    %644 = vmatprep.subr.mxu0 0.0
    %v645 = vand.u32 %v63, 4294901760
    %646 = vmatpush2.msra.mxu0 %v645
    %647 = vmatprep.subr.mxu0 0.0
    %v648 = vand.u32 %v62, 4294901760
    %649 = vmatpush2.msra.mxu0 %v648
    %650 = vmatprep.subr.mxu0 0.0
    %v651 = vand.u32 %v61, 4294901760
    %652 = vmatpush2.msra.mxu0 %v651
    %653 = vmatprep.subr.mxu0 0.0
    %v654 = vand.u32 %v60, 4294901760
    %655 = vmatpush2.msra.mxu0 %v654
    %656 = vmatprep.subr.mxu0 0.0
    %v657 = vand.u32 %v59, 4294901760
    %658 = vmatpush2.msra.mxu0 %v657
    %659 = vmatprep.subr.mxu0 0.0
    %v660 = vand.u32 %v58, 4294901760
    %661 = vmatpush2.msra.mxu0 %v660
    %v662 = vand.u32 %v82, 4294901760
    %v663 = vsub.f32 %v82, %v662
    %v664 = vand.u32 %v663, 4294901760
    %665 = vmatprep.mubr.f32.mxu0 %v664
    %v666 = vand.u32 %v41, 4294901760
    %v667 = vsub.f32 %v41, %v666
    %v668 = vand.u32 %v667, 4294901760
    %669 = vmatmul.mubr.f32.gmra.mxu0 %v668
    %v670 = vpop.f32.mrf.mxu0
    %v671 = vadd.f32 %v563, %v670
    %v672 = vpop.f32.mrf.mxu0
    %673 = vdwg.mxu0
    %674 = vmatprep.subr.mxu0 0.0
    %v675 = vand.u32 %v57, 4294901760
    %v676 = vsub.f32 %v57, %v675
    %v677 = vand.u32 %v676, 4294901760
    %678 = vmatpush1.msra.mxu0 %v677
    %679 = vmatprep.subr.mxu0 0.0
    %v680 = vand.u32 %v56, 4294901760
    %v681 = vsub.f32 %v56, %v680
    %v682 = vand.u32 %v681, 4294901760
    %683 = vmatpush1.msra.mxu0 %v682
    %684 = vmatprep.subr.mxu0 0.0
    %v685 = vand.u32 %v55, 4294901760
    %v686 = vsub.f32 %v55, %v685
    %v687 = vand.u32 %v686, 4294901760
    %688 = vmatpush1.msra.mxu0 %v687
    %689 = vmatprep.subr.mxu0 0.0
    %v690 = vand.u32 %v54, 4294901760
    %v691 = vsub.f32 %v54, %v690
    %v692 = vand.u32 %v691, 4294901760
    %693 = vmatpush1.msra.mxu0 %v692
    %694 = vmatprep.subr.mxu0 0.0
    %v695 = vand.u32 %v53, 4294901760
    %v696 = vsub.f32 %v53, %v695
    %v697 = vand.u32 %v696, 4294901760
    %698 = vmatpush1.msra.mxu0 %v697
    %699 = vmatprep.subr.mxu0 0.0
    %v700 = vand.u32 %v52, 4294901760
    %v701 = vsub.f32 %v52, %v700
    %v702 = vand.u32 %v701, 4294901760
    %703 = vmatpush1.msra.mxu0 %v702
    %704 = vmatprep.subr.mxu0 0.0
    %v705 = vand.u32 %v51, 4294901760
    %v706 = vsub.f32 %v51, %v705
    %v707 = vand.u32 %v706, 4294901760
    %708 = vmatpush1.msra.mxu0 %v707
    %709 = vmatprep.subr.mxu0 0.0
    %v710 = vand.u32 %v50, 4294901760
    %v711 = vsub.f32 %v50, %v710
    %v712 = vand.u32 %v711, 4294901760
    %713 = vmatpush1.msra.mxu0 %v712
    %714 = vmatprep.subr.mxu0 0.0
    %v715 = vand.u32 %v49, 4294901760
    %v716 = vsub.f32 %v49, %v715
    %v717 = vand.u32 %v716, 4294901760
    %718 = vmatpush1.msra.mxu0 %v717
    %719 = vmatprep.subr.mxu0 0.0
    %v720 = vand.u32 %v48, 4294901760
    %v721 = vsub.f32 %v48, %v720
    %v722 = vand.u32 %v721, 4294901760
    %723 = vmatpush1.msra.mxu0 %v722
    %724 = vmatprep.subr.mxu0 0.0
    %v725 = vand.u32 %v47, 4294901760
    %v726 = vsub.f32 %v47, %v725
    %v727 = vand.u32 %v726, 4294901760
    %728 = vmatpush1.msra.mxu0 %v727
    %729 = vmatprep.subr.mxu0 0.0
    %v730 = vand.u32 %v46, 4294901760
    %v731 = vsub.f32 %v46, %v730
    %v732 = vand.u32 %v731, 4294901760
    %733 = vmatpush1.msra.mxu0 %v732
    %734 = vmatprep.subr.mxu0 0.0
    %v735 = vand.u32 %v45, 4294901760
    %v736 = vsub.f32 %v45, %v735
    %v737 = vand.u32 %v736, 4294901760
    %738 = vmatpush1.msra.mxu0 %v737
    %739 = vmatprep.subr.mxu0 0.0
    %v740 = vand.u32 %v44, 4294901760
    %v741 = vsub.f32 %v44, %v740
    %v742 = vand.u32 %v741, 4294901760
    %743 = vmatpush1.msra.mxu0 %v742
    %744 = vmatprep.subr.mxu0 0.0
    %v745 = vand.u32 %v43, 4294901760
    %v746 = vsub.f32 %v43, %v745
    %v747 = vand.u32 %v746, 4294901760
    %748 = vmatpush1.msra.mxu0 %v747
    %749 = vmatprep.subr.mxu0 0.0
    %v750 = vand.u32 %v42, 4294901760
    %v751 = vsub.f32 %v42, %v750
    %v752 = vand.u32 %v751, 4294901760
    %753 = vmatpush1.msra.mxu0 %v752
    %754 = vmatprep.subr.mxu0 0.0
    %v755 = vand.u32 %v73, 4294901760
    %v756 = vsub.f32 %v73, %v755
    %v757 = vand.u32 %v756, 4294901760
    %758 = vmatpush2.msra.mxu0 %v757
    %759 = vmatprep.subr.mxu0 0.0
    %v760 = vand.u32 %v72, 4294901760
    %v761 = vsub.f32 %v72, %v760
    %v762 = vand.u32 %v761, 4294901760
    %763 = vmatpush2.msra.mxu0 %v762
    %764 = vmatprep.subr.mxu0 0.0
    %v765 = vand.u32 %v71, 4294901760
    %v766 = vsub.f32 %v71, %v765
    %v767 = vand.u32 %v766, 4294901760
    %768 = vmatpush2.msra.mxu0 %v767
    %769 = vmatprep.subr.mxu0 0.0
    %v770 = vand.u32 %v70, 4294901760
    %v771 = vsub.f32 %v70, %v770
    %v772 = vand.u32 %v771, 4294901760
    %773 = vmatpush2.msra.mxu0 %v772
    %774 = vmatprep.subr.mxu0 0.0
    %v775 = vand.u32 %v69, 4294901760
    %v776 = vsub.f32 %v69, %v775
    %v777 = vand.u32 %v776, 4294901760
    %778 = vmatpush2.msra.mxu0 %v777
    %779 = vmatprep.subr.mxu0 0.0
    %v780 = vand.u32 %v68, 4294901760
    %v781 = vsub.f32 %v68, %v780
    %v782 = vand.u32 %v781, 4294901760
    %783 = vmatpush2.msra.mxu0 %v782
    %784 = vmatprep.subr.mxu0 0.0
    %v785 = vand.u32 %v67, 4294901760
    %v786 = vsub.f32 %v67, %v785
    %v787 = vand.u32 %v786, 4294901760
    %788 = vmatpush2.msra.mxu0 %v787
    %789 = vmatprep.subr.mxu0 0.0
    %v790 = vand.u32 %v66, 4294901760
    %v791 = vsub.f32 %v66, %v790
    %v792 = vand.u32 %v791, 4294901760
    %793 = vmatpush2.msra.mxu0 %v792
    %794 = vmatprep.subr.mxu0 0.0
    %v795 = vand.u32 %v65, 4294901760
    %v796 = vsub.f32 %v65, %v795
    %v797 = vand.u32 %v796, 4294901760
    %798 = vmatpush2.msra.mxu0 %v797
    %799 = vmatprep.subr.mxu0 0.0
    %v800 = vand.u32 %v64, 4294901760
    %v801 = vsub.f32 %v64, %v800
    %v802 = vand.u32 %v801, 4294901760
    %803 = vmatpush2.msra.mxu0 %v802
    %804 = vmatprep.subr.mxu0 0.0
    %v805 = vand.u32 %v63, 4294901760
    %v806 = vsub.f32 %v63, %v805
    %v807 = vand.u32 %v806, 4294901760
    %808 = vmatpush2.msra.mxu0 %v807
    %809 = vmatprep.subr.mxu0 0.0
    %v810 = vand.u32 %v62, 4294901760
    %v811 = vsub.f32 %v62, %v810
    %v812 = vand.u32 %v811, 4294901760
    %813 = vmatpush2.msra.mxu0 %v812
    %814 = vmatprep.subr.mxu0 0.0
    %v815 = vand.u32 %v61, 4294901760
    %v816 = vsub.f32 %v61, %v815
    %v817 = vand.u32 %v816, 4294901760
    %818 = vmatpush2.msra.mxu0 %v817
    %819 = vmatprep.subr.mxu0 0.0
    %v820 = vand.u32 %v60, 4294901760
    %v821 = vsub.f32 %v60, %v820
    %v822 = vand.u32 %v821, 4294901760
    %823 = vmatpush2.msra.mxu0 %v822
    %824 = vmatprep.subr.mxu0 0.0
    %v825 = vand.u32 %v59, 4294901760
    %v826 = vsub.f32 %v59, %v825
    %v827 = vand.u32 %v826, 4294901760
    %828 = vmatpush2.msra.mxu0 %v827
    %829 = vmatprep.subr.mxu0 0.0
    %v830 = vand.u32 %v58, 4294901760
    %v831 = vsub.f32 %v58, %v830
    %v832 = vand.u32 %v831, 4294901760
    %833 = vmatpush2.msra.mxu0 %v832
    %v834 = vand.u32 %v82, 4294901760
    %835 = vmatprep.mubr.f32.mxu0 %v834
    %v836 = vand.u32 %v41, 4294901760
    %837 = vmatmul.mubr.f32.gmra.mxu0 %v836
    %v838 = vpop.f32.mrf.mxu0
    %v839 = vadd.f32 %v671, %v838
    %v840 = vpop.f32.mrf.mxu0
    %841 = vdwg.mxu0
    %842 = vmatprep.subr.mxu0 0.0
    %v843 = vand.u32 %v57, 4294901760
    %844 = vmatpush1.msra.mxu0 %v843
    %845 = vmatprep.subr.mxu0 0.0
    %v846 = vand.u32 %v56, 4294901760
    %847 = vmatpush1.msra.mxu0 %v846
    %848 = vmatprep.subr.mxu0 0.0
    %v849 = vand.u32 %v55, 4294901760
    %850 = vmatpush1.msra.mxu0 %v849
    %851 = vmatprep.subr.mxu0 0.0
    %v852 = vand.u32 %v54, 4294901760
    %853 = vmatpush1.msra.mxu0 %v852
    %854 = vmatprep.subr.mxu0 0.0
    %v855 = vand.u32 %v53, 4294901760
    %856 = vmatpush1.msra.mxu0 %v855
    %857 = vmatprep.subr.mxu0 0.0
    %v858 = vand.u32 %v52, 4294901760
    %859 = vmatpush1.msra.mxu0 %v858
    %860 = vmatprep.subr.mxu0 0.0
    %v861 = vand.u32 %v51, 4294901760
    %862 = vmatpush1.msra.mxu0 %v861
    %863 = vmatprep.subr.mxu0 0.0
    %v864 = vand.u32 %v50, 4294901760
    %865 = vmatpush1.msra.mxu0 %v864
    %866 = vmatprep.subr.mxu0 0.0
    %v867 = vand.u32 %v49, 4294901760
    %868 = vmatpush1.msra.mxu0 %v867
    %869 = vmatprep.subr.mxu0 0.0
    %v870 = vand.u32 %v48, 4294901760
    %871 = vmatpush1.msra.mxu0 %v870
    %872 = vmatprep.subr.mxu0 0.0
    %v873 = vand.u32 %v47, 4294901760
    %874 = vmatpush1.msra.mxu0 %v873
    %875 = vmatprep.subr.mxu0 0.0
    %v876 = vand.u32 %v46, 4294901760
    %877 = vmatpush1.msra.mxu0 %v876
    %878 = vmatprep.subr.mxu0 0.0
    %v879 = vand.u32 %v45, 4294901760
    %880 = vmatpush1.msra.mxu0 %v879
    %881 = vmatprep.subr.mxu0 0.0
    %v882 = vand.u32 %v44, 4294901760
    %883 = vmatpush1.msra.mxu0 %v882
    %884 = vmatprep.subr.mxu0 0.0
    %v885 = vand.u32 %v43, 4294901760
    %886 = vmatpush1.msra.mxu0 %v885
    %887 = vmatprep.subr.mxu0 0.0
    %v888 = vand.u32 %v42, 4294901760
    %889 = vmatpush1.msra.mxu0 %v888
    %890 = vmatprep.subr.mxu0 0.0
    %v891 = vand.u32 %v73, 4294901760
    %892 = vmatpush2.msra.mxu0 %v891
    %893 = vmatprep.subr.mxu0 0.0
    %v894 = vand.u32 %v72, 4294901760
    %895 = vmatpush2.msra.mxu0 %v894
    %896 = vmatprep.subr.mxu0 0.0
    %v897 = vand.u32 %v71, 4294901760
    %898 = vmatpush2.msra.mxu0 %v897
    %899 = vmatprep.subr.mxu0 0.0
    %v900 = vand.u32 %v70, 4294901760
    %901 = vmatpush2.msra.mxu0 %v900
    %902 = vmatprep.subr.mxu0 0.0
    %v903 = vand.u32 %v69, 4294901760
    %904 = vmatpush2.msra.mxu0 %v903
    %905 = vmatprep.subr.mxu0 0.0
    %v906 = vand.u32 %v68, 4294901760
    %907 = vmatpush2.msra.mxu0 %v906
    %908 = vmatprep.subr.mxu0 0.0
    %v909 = vand.u32 %v67, 4294901760
    %910 = vmatpush2.msra.mxu0 %v909
    %911 = vmatprep.subr.mxu0 0.0
    %v912 = vand.u32 %v66, 4294901760
    %913 = vmatpush2.msra.mxu0 %v912
    %914 = vmatprep.subr.mxu0 0.0
    %v915 = vand.u32 %v65, 4294901760
    %916 = vmatpush2.msra.mxu0 %v915
    %917 = vmatprep.subr.mxu0 0.0
    %v918 = vand.u32 %v64, 4294901760
    %919 = vmatpush2.msra.mxu0 %v918
    %920 = vmatprep.subr.mxu0 0.0
    %v921 = vand.u32 %v63, 4294901760
    %922 = vmatpush2.msra.mxu0 %v921
    %923 = vmatprep.subr.mxu0 0.0
    %v924 = vand.u32 %v62, 4294901760
    %925 = vmatpush2.msra.mxu0 %v924
    %926 = vmatprep.subr.mxu0 0.0
    %v927 = vand.u32 %v61, 4294901760
    %928 = vmatpush2.msra.mxu0 %v927
    %929 = vmatprep.subr.mxu0 0.0
    %v930 = vand.u32 %v60, 4294901760
    %931 = vmatpush2.msra.mxu0 %v930
    %932 = vmatprep.subr.mxu0 0.0
    %v933 = vand.u32 %v59, 4294901760
    %934 = vmatpush2.msra.mxu0 %v933
    %935 = vmatprep.subr.mxu0 0.0
    %v936 = vand.u32 %v58, 4294901760
    %937 = vmatpush2.msra.mxu0 %v936
    %v938 = vand.u32 %v82, 4294901760
    %939 = vmatprep.mubr.f32.mxu0 %v938
    %v940 = vand.u32 %v41, 4294901760
    %941 = vmatmul.mubr.f32.gmra.mxu0 %v940
    %v942 = vpop.f32.mrf.mxu0
    %v943 = vadd.f32 %v839, %v942
    %v944 = vpop.f32.mrf.mxu0
    %945 = vdwg.mxu0
    %946 = vst [vmem:[#allocation7] sm:$0xf] %v943
    // Predicated region
    $region22: #{tpu_custom_call.1} parent=1 // pred_check
      _
    $region23: #{tpu_custom_call.1} parent=1 // pred_check_branch
      %948 = sbr.rel (0) target = $region25
    $region24: #{tpu_custom_call.1} parent=1 // pred_region
      %s950 = ssub.s32 64, 64
      %951 = vsyncadd [#allocation4], %s950
      %s953 = sshll.u32 [#allocation7], 4
      %s954 = int_to_ptr.vmem [resolvable:$true] %s953
      %956 = dma.vmem_to_hbm [thread:$0]  %s954, 64, %s3, [#allocation4]
    $region25: #{tpu_custom_call.1} parent=1 // pred_fallthru
      _
    // Predicated region
    $region26: #{tpu_custom_call.1} parent=1 // pred_check
      _
    $region27: #{tpu_custom_call.1} parent=1 // pred_check_branch
      %958 = sbr.rel (0) target = $region29
    $region28: #{tpu_custom_call.1} parent=1 // pred_region
      %959 = dma.done [#allocation4], 64
    $region29: #{tpu_custom_call.1} parent=1 // pred_fallthru
      _
    %960 = vsyncpa [#allocation3], 1
    %961 = vsyncpa [#allocation6], 1
    %962 = vsyncpa [#allocation4], 1

</llo_original>
